<compile_context>
chip_gen: v5e
topology: v5e:2x2
jax: 0.10.0
libtpu: 0.0.40
codegen_flags: <defaults>
</compile_context>

<pallas_src>
import math

import jax
import jax.numpy as jnp
from jax.experimental import pallas as pl
from jax.experimental.pallas import tpu as pltpu

WEIGHT_CE = 1.0
WEIGHT_DICE = 1.0
SMOOTH = 1.0
_LN2 = math.log(2.0)


def _loss_kernel(x_ref, y_ref, out_ref, inter_acc, sump_acc, sumg_acc, bce_acc):
    """Per-(batch*channel)-row partial reductions over one spatial tile.

    Grid = (nsplit 'parallel', num_k 'arbitrary'); the spatial reduction axis is
    innermost so the per-row f32 scratch accumulators stay resident across it.
    """
    k = pl.program_id(1)

    @pl.when(k == 0)
    def _init():
        inter_acc[...] = jnp.zeros_like(inter_acc)
        sump_acc[...] = jnp.zeros_like(sump_acc)
        sumg_acc[...] = jnp.zeros_like(sumg_acc)
        bce_acc[...] = jnp.zeros_like(bce_acc)

    x = x_ref[...].astype(jnp.float32)
    y = y_ref[...].astype(jnp.float32)

    # One exp(-|x|) per element is shared between sigmoid and the numerically
    # stable BCE-with-logits.  The sigmoid denominator uses the EUP approximate
    # reciprocal + one Newton step instead of a multi-op f32 VALU divide.
    e = jnp.exp(-jnp.abs(x))                        # EUP exp
    denom = 1.0 + e
    r = pl.reciprocal(denom, approx=True)           # EUP vrcp
    r = r * (2.0 - denom * r)                       # one Newton step -> ~f32 accurate
    p = jnp.where(x >= 0, 1.0, e) * r               # == sigmoid(x)
    bce = jnp.maximum(x, 0.0) - x * y + jnp.log1p(e)

    # Per-row partial sums for this spatial tile.  No masking: padded columns,
    # if any, are corrected analytically in the JAX finalize.
    inter_acc[...] += jnp.sum(p * y, axis=1, keepdims=True)
    sump_acc[...] += jnp.sum(p, axis=1, keepdims=True)
    sumg_acc[...] += jnp.sum(y, axis=1, keepdims=True)
    bce_acc[...] += jnp.sum(bce, axis=1, keepdims=True)

    @pl.when(k == pl.num_programs(1) - 1)
    def _finalize():
        # Pack the four per-row partial sums into lanes 0..3 of a lane-dense
        # (BC, 128) output block (one full-width store).
        bc = out_ref.shape[1]
        col = jax.lax.broadcasted_iota(jnp.int32, (bc, 128), 1)
        packed = (jnp.where(col == 0, inter_acc[...], 0.0)
                  + jnp.where(col == 1, sump_acc[...], 0.0)
                  + jnp.where(col == 2, sumg_acc[...], 0.0)
                  + jnp.where(col == 3, bce_acc[...], 0.0))
        out_ref[0] = packed


def _device_kind():
    try:
        return jax.devices()[0].device_kind.lower()
    except Exception:
        return ""


def _is_v7x(kind=None):
    kind = _device_kind() if kind is None else kind
    return ("v7" in kind) or ("7x" in kind)


def _vmem_budgets():
    """(input-block sizing budget, scoped-VMEM limit) per TPU generation."""
    kind = _device_kind()
    cap = None
    try:
        cap = int(getattr(pltpu.get_tpu_info(), "vmem_capacity_bytes", 0)) or None
    except Exception:
        cap = None
    big = (cap is not None and cap >= 100 * 1024 * 1024) or (
        cap is None and not _is_v7x(kind)
        and any(t in kind for t in ("v4", "v5", "v6")))
    if big and not _is_v7x(kind):
        return 40 * 1024 * 1024, 80 * 1024 * 1024    # 128 MiB-VMEM parts
    return 12 * 1024 * 1024, 32 * 1024 * 1024        # v7x-safe / conservative


def _pick_tile(hw, max_tile, prefer_even_count):
    """Largest multiple-of-128 tile that divides hw (requires hw % 128 == 0).

    If prefer_even_count, prefer the largest such tile giving an even number of
    tiles so the 2-way v7x split can engage.
    """
    q = hw // 128
    max_d = max(1, min(q, max_tile // 128))
    best = None
    best_even = None
    for d in range(max_d, 0, -1):
        if q % d:
            continue
        if best is None:
            best = d
        if prefer_even_count and (q // d) % 2 == 0:
            best_even = d
            break
        if not prefer_even_count:
            break
    d = best_even if best_even is not None else best
    return d * 128


def dc_and_bce_loss(net_output, target, *, tile_k=None, nsplit=None,
                    weight_ce=WEIGHT_CE, weight_dice=WEIGHT_DICE):
    """Forward pass of nnUNetv2 DC_and_BCE_loss (use_ignore_label=False).

    net_output / target: NCHW arrays of identical shape (one-hot regions).
    Inputs may be bf16/f32 logits and int8/bf16/f32 targets; the f32 upcast
    happens inside the kernel so HBM traffic stays at the input precision
    (pass bf16 logits + int8 targets on memory-bound v5e for ~2.5x roofline).
    """
    assert net_output.shape == target.shape
    B, C, H, W = net_output.shape
    BC, HW = B * C, H * W
    x2d = net_output.reshape(BC, HW)
    y2d = target.reshape(BC, HW)

    budget, vmem_limit = _vmem_budgets()
    want_split = _is_v7x() if nsplit is None else (nsplit >= 2)

    # Auto-size the spatial tile: 2 inputs x 2 pipeline buffers at input dtype
    # plus the in-kernel f32 temporaries, under the per-generation VMEM budget.
    per_col = BC * (2 * (x2d.dtype.itemsize + y2d.dtype.itemsize) + 28)
    max_tile = max(128, min(65536, (budget // per_col) // 128 * 128))
    max_tile = min(max_tile, pl.cdiv(HW, 128) * 128)

    pad_c = 0
    if tile_k is not None:
        assert tile_k % 128 == 0
        if HW % tile_k:
            pad_c = pl.cdiv(HW, tile_k) * tile_k - HW
    elif HW % 128 == 0:
        # Common nnUNet case: exact-divisor tile -> no jnp.pad, no masking.
        tile_k = _pick_tile(HW, max_tile, prefer_even_count=want_split)
    else:
        # Ragged fallback: zero-pad the spatial axis once and analytically
        # correct the padded columns' contribution in the finalize.
        tile_k = max_tile
        mult = tile_k * (2 if want_split else 1)
        pad_c = pl.cdiv(HW, mult) * mult - HW

    if pad_c:
        x2d = jnp.pad(x2d, ((0, 0), (0, pad_c)))
        y2d = jnp.pad(y2d, ((0, 0), (0, pad_c)))

    num_k_total = (HW + pad_c) // tile_k
    use_split = want_split and num_k_total >= 2 and num_k_total % 2 == 0
    ns = 2 if use_split else 1
    num_k = num_k_total // ns

    in_map = lambda s, k: (0, s * num_k + k)

    partials = pl.pallas_call(
        _loss_kernel,
        out_shape=jax.ShapeDtypeStruct((ns, BC, 128), jnp.float32),
        grid_spec=pltpu.PrefetchScalarGridSpec(
            num_scalar_prefetch=0,
            grid=(ns, num_k),
            in_specs=[
                pl.BlockSpec((BC, tile_k), in_map),
                pl.BlockSpec((BC, tile_k), in_map),
            ],
            out_specs=pl.BlockSpec((1, BC, 128), lambda s, k: (s, 0, 0)),
            scratch_shapes=[pltpu.VMEM((BC, 1), jnp.float32)] * 4,
        ),
        compiler_params=pltpu.CompilerParams(
            dimension_semantics=("parallel", "arbitrary"),
            vmem_limit_bytes=vmem_limit,
        ),
    )(x2d, y2d)

    # Tiny O(BC) finalize in plain JAX: combine the parallel splits and form
    # dice ratio + means + weighted sum.
    totals = jnp.sum(partials[:, :, :4], axis=0)              # (BC, 4)
    intersect, sum_pred, sum_gt, bce_rows = (
        totals[:, 0], totals[:, 1], totals[:, 2], totals[:, 3])
    if pad_c:
        # Zero-padded columns contribute exactly sigmoid(0)=0.5 to sum_pred and
        # ln(2) to BCE per padded element; intersect / sum_gt gain nothing.
        sum_pred = sum_pred - 0.5 * pad_c
        bce_rows = bce_rows - _LN2 * pad_c

    dc = (2.0 * intersect + SMOOTH) / jnp.maximum(sum_gt + sum_pred + SMOOTH, 1e-8)
    dc_loss = -jnp.mean(dc)
    ce_loss = jnp.sum(bce_rows) / (BC * HW)
    return weight_ce * ce_loss + weight_dice * dc_loss


def _reference_loss(net_output, target):
    """Plain-JAX reference mirroring the PyTorch module, for verification."""
    x = net_output.astype(jnp.float32)
    y = target.astype(jnp.float32)
    p = jax.nn.sigmoid(x)
    axes = (2, 3)
    intersect = jnp.sum(p * y, axis=axes)
    sum_pred = jnp.sum(p, axis=axes)
    sum_gt = jnp.sum(y, axis=axes)
    dc = (2.0 * intersect + SMOOTH) / jnp.maximum(sum_gt + sum_pred + SMOOTH, 1e-8)
    dc_loss = -jnp.mean(dc)
    bce = jnp.maximum(x, 0.0) - x * y + jnp.log1p(jnp.exp(-jnp.abs(x)))
    ce_loss = jnp.mean(bce)
    return WEIGHT_CE * ce_loss + WEIGHT_DICE * dc_loss


if __name__ == "__main__":
    key = jax.random.PRNGKey(0)
    k1, k2, k3, k4, k5, k6 = jax.random.split(key, 6)

    # Case 1: aligned shapes (BC=8, HW=256); tile_k=128 + forced 2-way split
    # exercises the multi-split partial-sum combine regardless of hardware.
    B, C, H, W = 2, 4, 16, 16
    x1 = jax.random.normal(k1, (B, C, H, W), dtype=jnp.float32)
    y1 = jax.random.bernoulli(k2, p=0.3, shape=(B, C, H, W)).astype(jnp.float32)
    loss1 = jax.block_until_ready(dc_and_bce_loss(x1, y1, tile_k=128, nsplit=2))
    ref1 = jax.block_until_ready(_reference_loss(x1, y1))
    assert jnp.allclose(loss1, ref1, rtol=1e-5, atol=1e-5), (loss1, ref1)

    # Case 2: unaligned shapes (BC=3, HW=130) -> exercises the ragged-HW
    # column-pad path, the analytic padding correction, and BC < 8 rows.
    B2, C2, H2, W2 = 1, 3, 10, 13
    x2 = jax.random.normal(k3, (B2, C2, H2, W2), dtype=jnp.float32)
    y2 = jax.random.bernoulli(k4, p=0.4, shape=(B2, C2, H2, W2)).astype(jnp.float32)
    loss2 = jax.block_until_ready(dc_and_bce_loss(x2, y2, tile_k=128))
    ref2 = jax.block_until_ready(_reference_loss(x2, y2))
    assert jnp.allclose(loss2, ref2, rtol=1e-5, atol=1e-5), (loss2, ref2)

    # Case 3: auto tile selection (HW % 128 == 0 -> exact-divisor tile, no pad)
    # with bf16 logits / int8 targets (native-dtype HBM loads, in-kernel upcast).
    B3, C3, H3, W3 = 2, 4, 32, 32
    x3 = jax.random.normal(k5, (B3, C3, H3, W3), dtype=jnp.float32)
    y3 = jax.random.bernoulli(k6, p=0.25, shape=(B3, C3, H3, W3))
    loss3 = jax.block_until_ready(
        dc_and_bce_loss(x3.astype(jnp.bfloat16), y3.astype(jnp.int8)))
    ref3 = jax.block_until_ready(
        _reference_loss(x3.astype(jnp.bfloat16), y3.astype(jnp.int8)))
    assert jnp.allclose(loss3, ref3, rtol=1e-5, atol=1e-5), (loss3, ref3)

    print("KERNEL_OK")
</pallas_src>

<mosaic_0001>
module attributes {stable_mosaic.version = 11 : i64} {
  func.func @_loss_kernel(%arg0: i32, %arg1: i32, %arg2: memref<8x128xf32, #tpu.memory_space<vmem>>, %arg3: memref<8x128xf32, #tpu.memory_space<vmem>>, %arg4: memref<1x8x128xf32, #tpu.memory_space<vmem>>, %arg5: memref<8x1xf32, #tpu.memory_space<vmem>>, %arg6: memref<8x1xf32, #tpu.memory_space<vmem>>, %arg7: memref<8x1xf32, #tpu.memory_space<vmem>>, %arg8: memref<8x1xf32, #tpu.memory_space<vmem>>) attributes {dimension_semantics = [#tpu.dimension_semantics<parallel>, #tpu.dimension_semantics<arbitrary>], iteration_bounds = array<i64: 2, 1>, scalar_prefetch = 0 : i64, scratch_operands = 4 : i64, tpu.core_type = #tpu.core_type<tc>, window_params = [{transform_indices = @transform_0, window_bounds = array<i64: 8, 128>}, {transform_indices = @transform_1, window_bounds = array<i64: 8, 128>}, {transform_indices = @transform_2, window_bounds = array<i64: 1, 8, 128>}]} {
    %c0_i32 = arith.constant 0 : i32
    %0 = arith.cmpi eq, %arg1, %c0_i32 : i32
    %1 = arith.extui %0 : i1 to i32
    %c0_i32_0 = arith.constant 0 : i32
    %2 = arith.cmpi ne, %1, %c0_i32_0 : i32
    scf.if %2 {
      %cst_31 = arith.constant 0.000000e+00 : f32
      %51 = vector.broadcast %cst_31 : f32 to vector<8x1xf32>
      %c0_32 = arith.constant 0 : index
      %c0_33 = arith.constant 0 : index
      %52 = vector.load %arg5[%c0_32, %c0_33] : memref<8x1xf32, #tpu.memory_space<vmem>>, vector<8x1xf32>
      tpu.vector_store %arg5[%c0_32, %c0_33], %51 {strides = array<i32>} : memref<8x1xf32, #tpu.memory_space<vmem>>, vector<8x1xf32>,
      %cst_34 = arith.constant 0.000000e+00 : f32
      %53 = vector.broadcast %cst_34 : f32 to vector<8x1xf32>
      %c0_35 = arith.constant 0 : index
      %c0_36 = arith.constant 0 : index
      %54 = vector.load %arg6[%c0_35, %c0_36] : memref<8x1xf32, #tpu.memory_space<vmem>>, vector<8x1xf32>
      tpu.vector_store %arg6[%c0_35, %c0_36], %53 {strides = array<i32>} : memref<8x1xf32, #tpu.memory_space<vmem>>, vector<8x1xf32>,
      %cst_37 = arith.constant 0.000000e+00 : f32
      %55 = vector.broadcast %cst_37 : f32 to vector<8x1xf32>
      %c0_38 = arith.constant 0 : index
      %c0_39 = arith.constant 0 : index
      %56 = vector.load %arg7[%c0_38, %c0_39] : memref<8x1xf32, #tpu.memory_space<vmem>>, vector<8x1xf32>
      tpu.vector_store %arg7[%c0_38, %c0_39], %55 {strides = array<i32>} : memref<8x1xf32, #tpu.memory_space<vmem>>, vector<8x1xf32>,
      %cst_40 = arith.constant 0.000000e+00 : f32
      %57 = vector.broadcast %cst_40 : f32 to vector<8x1xf32>
      %c0_41 = arith.constant 0 : index
      %c0_42 = arith.constant 0 : index
      %58 = vector.load %arg8[%c0_41, %c0_42] : memref<8x1xf32, #tpu.memory_space<vmem>>, vector<8x1xf32>
      tpu.vector_store %arg8[%c0_41, %c0_42], %57 {strides = array<i32>} : memref<8x1xf32, #tpu.memory_space<vmem>>, vector<8x1xf32>,
    } else {
    }
    %c0 = arith.constant 0 : index
    %c0_1 = arith.constant 0 : index
    %3 = vector.load %arg2[%c0, %c0_1] : memref<8x128xf32, #tpu.memory_space<vmem>>, vector<8x128xf32>
    %c0_2 = arith.constant 0 : index
    %c0_3 = arith.constant 0 : index
    %4 = vector.load %arg3[%c0_2, %c0_3] : memref<8x128xf32, #tpu.memory_space<vmem>>, vector<8x128xf32>
    %5 = math.absf %3 : vector<8x128xf32>
    %cst = arith.constant 0.000000e+00 : f32
    %6 = vector.broadcast %cst : f32 to vector<8x128xf32>
    %7 = arith.subf %6, %5 : vector<8x128xf32>
    %8 = math.exp %7 : vector<8x128xf32>
    %cst_4 = arith.constant 1.000000e+00 : f32
    %9 = vector.broadcast %cst_4 : f32 to vector<8x128xf32>
    %10 = arith.addf %9, %8 : vector<8x128xf32>
    %11 = tpu.reciprocal %10 {approx = true} : vector<8x128xf32> -> vector<8x128xf32>
    %12 = arith.mulf %10, %11 : vector<8x128xf32>
    %cst_5 = arith.constant 2.000000e+00 : f32
    %13 = vector.broadcast %cst_5 : f32 to vector<8x128xf32>
    %14 = arith.subf %13, %12 : vector<8x128xf32>
    %15 = arith.mulf %11, %14 : vector<8x128xf32>
    %cst_6 = arith.constant 0.000000e+00 : f32
    %16 = vector.broadcast %cst_6 : f32 to vector<8x128xf32>
    %17 = arith.cmpf oge, %3, %16 : vector<8x128xf32>
    %cst_7 = arith.constant 1.000000e+00 : f32
    %18 = vector.broadcast %cst_7 : f32 to vector<8x128xf32>
    %19 = arith.select %17, %18, %8 : vector<8x128xi1>, vector<8x128xf32>
    %20 = arith.mulf %19, %15 : vector<8x128xf32>
    %cst_8 = arith.constant 0.000000e+00 : f32
    %21 = vector.broadcast %cst_8 : f32 to vector<8x128xf32>
    %22 = arith.maximumf %3, %21 : vector<8x128xf32>
    %23 = arith.mulf %3, %4 : vector<8x128xf32>
    %24 = arith.subf %22, %23 : vector<8x128xf32>
    %25 = math.log1p %8 : vector<8x128xf32>
    %26 = arith.addf %24, %25 : vector<8x128xf32>
    %c0_9 = arith.constant 0 : index
    %c0_10 = arith.constant 0 : index
    %27 = vector.load %arg5[%c0_9, %c0_10] : memref<8x1xf32, #tpu.memory_space<vmem>>, vector<8x1xf32>
    %28 = arith.mulf %20, %4 : vector<8x128xf32>
    %cst_11 = arith.constant dense<0.000000e+00> : vector<8xf32>
    %29 = vector.multi_reduction <add>, %28, %cst_11 [1] : vector<8x128xf32> to vector<8xf32>
    %30 = vector.shape_cast %29 : vector<8xf32> to vector<8x1xf32>
    %31 = arith.addf %27, %30 : vector<8x1xf32>
    %c0_12 = arith.constant 0 : index
    %c0_13 = arith.constant 0 : index
    %32 = vector.load %arg5[%c0_12, %c0_13] : memref<8x1xf32, #tpu.memory_space<vmem>>, vector<8x1xf32>
    tpu.vector_store %arg5[%c0_12, %c0_13], %31 {strides = array<i32>} : memref<8x1xf32, #tpu.memory_space<vmem>>, vector<8x1xf32>,
    %c0_14 = arith.constant 0 : index
    %c0_15 = arith.constant 0 : index
    %33 = vector.load %arg6[%c0_14, %c0_15] : memref<8x1xf32, #tpu.memory_space<vmem>>, vector<8x1xf32>
    %cst_16 = arith.constant dense<0.000000e+00> : vector<8xf32>
    %34 = vector.multi_reduction <add>, %20, %cst_16 [1] : vector<8x128xf32> to vector<8xf32>
    %35 = vector.shape_cast %34 : vector<8xf32> to vector<8x1xf32>
    %36 = arith.addf %33, %35 : vector<8x1xf32>
    %c0_17 = arith.constant 0 : index
    %c0_18 = arith.constant 0 : index
    %37 = vector.load %arg6[%c0_17, %c0_18] : memref<8x1xf32, #tpu.memory_space<vmem>>, vector<8x1xf32>
    tpu.vector_store %arg6[%c0_17, %c0_18], %36 {strides = array<i32>} : memref<8x1xf32, #tpu.memory_space<vmem>>, vector<8x1xf32>,
    %c0_19 = arith.constant 0 : index
    %c0_20 = arith.constant 0 : index
    %38 = vector.load %arg7[%c0_19, %c0_20] : memref<8x1xf32, #tpu.memory_space<vmem>>, vector<8x1xf32>
    %cst_21 = arith.constant dense<0.000000e+00> : vector<8xf32>
    %39 = vector.multi_reduction <add>, %4, %cst_21 [1] : vector<8x128xf32> to vector<8xf32>
    %40 = vector.shape_cast %39 : vector<8xf32> to vector<8x1xf32>
    %41 = arith.addf %38, %40 : vector<8x1xf32>
    %c0_22 = arith.constant 0 : index
    %c0_23 = arith.constant 0 : index
    %42 = vector.load %arg7[%c0_22, %c0_23] : memref<8x1xf32, #tpu.memory_space<vmem>>, vector<8x1xf32>
    tpu.vector_store %arg7[%c0_22, %c0_23], %41 {strides = array<i32>} : memref<8x1xf32, #tpu.memory_space<vmem>>, vector<8x1xf32>,
    %c0_24 = arith.constant 0 : index
    %c0_25 = arith.constant 0 : index
    %43 = vector.load %arg8[%c0_24, %c0_25] : memref<8x1xf32, #tpu.memory_space<vmem>>, vector<8x1xf32>
    %cst_26 = arith.constant dense<0.000000e+00> : vector<8xf32>
    %44 = vector.multi_reduction <add>, %26, %cst_26 [1] : vector<8x128xf32> to vector<8xf32>
    %45 = vector.shape_cast %44 : vector<8xf32> to vector<8x1xf32>
    %46 = arith.addf %43, %45 : vector<8x1xf32>
    %c0_27 = arith.constant 0 : index
    %c0_28 = arith.constant 0 : index
    %47 = vector.load %arg8[%c0_27, %c0_28] : memref<8x1xf32, #tpu.memory_space<vmem>>, vector<8x1xf32>
    tpu.vector_store %arg8[%c0_27, %c0_28], %46 {strides = array<i32>} : memref<8x1xf32, #tpu.memory_space<vmem>>, vector<8x1xf32>,
    %c0_i32_29 = arith.constant 0 : i32
    %48 = arith.cmpi eq, %arg1, %c0_i32_29 : i32
    %49 = arith.extui %48 : i1 to i32
    %c0_i32_30 = arith.constant 0 : i32
    %50 = arith.cmpi ne, %49, %c0_i32_30 : i32
    scf.if %50 {
      %51 = tpu.iota {dimensions = array<i32: 1>} : vector<8x128xi32>
      %c0_i32_31 = arith.constant 0 : i32
      %52 = vector.broadcast %c0_i32_31 : i32 to vector<8x128xi32>
      %53 = arith.cmpi eq, %51, %52 : vector<8x128xi32>
      %c0_32 = arith.constant 0 : index
      %c0_33 = arith.constant 0 : index
      %54 = vector.load %arg5[%c0_32, %c0_33] : memref<8x1xf32, #tpu.memory_space<vmem>>, vector<8x1xf32>
      %cst_34 = arith.constant 0.000000e+00 : f32
      %55 = vector.shape_cast %54 : vector<8x1xf32> to vector<8x1xf32>
      %56 = vector.broadcast %55 : vector<8x1xf32> to vector<8x128xf32>
      %57 = vector.broadcast %cst_34 : f32 to vector<8x128xf32>
      %58 = arith.select %53, %56, %57 : vector<8x128xi1>, vector<8x128xf32>
      %c1_i32 = arith.constant 1 : i32
      %59 = vector.broadcast %c1_i32 : i32 to vector<8x128xi32>
      %60 = arith.cmpi eq, %51, %59 : vector<8x128xi32>
      %c0_35 = arith.constant 0 : index
      %c0_36 = arith.constant 0 : index
      %61 = vector.load %arg6[%c0_35, %c0_36] : memref<8x1xf32, #tpu.memory_space<vmem>>, vector<8x1xf32>
      %cst_37 = arith.constant 0.000000e+00 : f32
      %62 = vector.shape_cast %61 : vector<8x1xf32> to vector<8x1xf32>
      %63 = vector.broadcast %62 : vector<8x1xf32> to vector<8x128xf32>
      %64 = vector.broadcast %cst_37 : f32 to vector<8x128xf32>
      %65 = arith.select %60, %63, %64 : vector<8x128xi1>, vector<8x128xf32>
      %66 = arith.addf %58, %65 : vector<8x128xf32>
      %c2_i32 = arith.constant 2 : i32
      %67 = vector.broadcast %c2_i32 : i32 to vector<8x128xi32>
      %68 = arith.cmpi eq, %51, %67 : vector<8x128xi32>
      %c0_38 = arith.constant 0 : index
      %c0_39 = arith.constant 0 : index
      %69 = vector.load %arg7[%c0_38, %c0_39] : memref<8x1xf32, #tpu.memory_space<vmem>>, vector<8x1xf32>
      %cst_40 = arith.constant 0.000000e+00 : f32
      %70 = vector.shape_cast %69 : vector<8x1xf32> to vector<8x1xf32>
      %71 = vector.broadcast %70 : vector<8x1xf32> to vector<8x128xf32>
      %72 = vector.broadcast %cst_40 : f32 to vector<8x128xf32>
      %73 = arith.select %68, %71, %72 : vector<8x128xi1>, vector<8x128xf32>
      %74 = arith.addf %66, %73 : vector<8x128xf32>
      %c3_i32 = arith.constant 3 : i32
      %75 = vector.broadcast %c3_i32 : i32 to vector<8x128xi32>
      %76 = arith.cmpi eq, %51, %75 : vector<8x128xi32>
      %c0_41 = arith.constant 0 : index
      %c0_42 = arith.constant 0 : index
      %77 = vector.load %arg8[%c0_41, %c0_42] : memref<8x1xf32, #tpu.memory_space<vmem>>, vector<8x1xf32>
      %cst_43 = arith.constant 0.000000e+00 : f32
      %78 = vector.shape_cast %77 : vector<8x1xf32> to vector<8x1xf32>
      %79 = vector.broadcast %78 : vector<8x1xf32> to vector<8x128xf32>
      %80 = vector.broadcast %cst_43 : f32 to vector<8x128xf32>
      %81 = arith.select %76, %79, %80 : vector<8x128xi1>, vector<8x128xf32>
      %82 = arith.addf %74, %81 : vector<8x128xf32>
      %c0_44 = arith.constant 0 : index
      %c0_45 = arith.constant 0 : index
      %c0_46 = arith.constant 0 : index
      %83 = vector.load %arg4[%c0_44, %c0_45, %c0_46] : memref<1x8x128xf32, #tpu.memory_space<vmem>>, vector<1x8x128xf32>
      %84 = vector.shape_cast %83 : vector<1x8x128xf32> to vector<8x128xf32>
      %85 = vector.shape_cast %82 : vector<8x128xf32> to vector<1x8x128xf32>
      tpu.vector_store %arg4[%c0_44, %c0_45, %c0_46], %85 {strides = array<i32>} : memref<1x8x128xf32, #tpu.memory_space<vmem>>, vector<1x8x128xf32>,
    } else {
    }
    return
  }
  func.func @transform_0(%arg0: i32, %arg1: i32) -> (i32, i32) {
    %c1_i32 = arith.constant 1 : i32
    %0 = arith.muli %arg0, %c1_i32 : i32
    %1 = arith.addi %0, %arg1 : i32
    %c0_i32 = arith.constant 0 : i32
    %c0_i32_0 = arith.constant 0 : i32
    return %c0_i32, %1 : i32, i32
  }
  func.func @transform_1(%arg0: i32, %arg1: i32) -> (i32, i32) {
    %c1_i32 = arith.constant 1 : i32
    %0 = arith.muli %arg0, %c1_i32 : i32
    %1 = arith.addi %0, %arg1 : i32
    %c0_i32 = arith.constant 0 : i32
    %c0_i32_0 = arith.constant 0 : i32
    return %c0_i32, %1 : i32, i32
  }
  func.func @transform_2(%arg0: i32, %arg1: i32) -> (i32, i32, i32) {
    %c0_i32 = arith.constant 0 : i32
    %c0_i32_0 = arith.constant 0 : i32
    %c0_i32_1 = arith.constant 0 : i32
    return %arg0, %c0_i32, %c0_i32_0 : i32, i32, i32
  }
}

</mosaic_0001>

<llo_original>
// kernel: tpu_custom_call.1
$region0: #{tpu_custom_call.1}
  #allocation0 [shape = 'u32[]', space=smem, size = 0x4, offset = 0x4, fixed_abs, tag = 'smem constant byte address 0x4 - core index']
  #allocation1 [shape = 'u32[72,128]{1,0:T(1,128)}', space=vmem, size = 0x9000, scoped, tag = 'internal scratch']
  #allocation2 [shape = 'f32[8,1]{1,0:T(8,128)}', space=vmem, size = 0x1000, scoped, tag = 'scratch operand']
  #allocation3 [shape = 'f32[8,1]{1,0:T(8,128)}', space=vmem, size = 0x1000, scoped, tag = 'scratch operand']
  #allocation4 [shape = 'f32[8,1]{1,0:T(8,128)}', space=vmem, size = 0x1000, scoped, tag = 'scratch operand']
  #allocation5 [shape = 'f32[8,1]{1,0:T(8,128)}', space=vmem, size = 0x1000, scoped, tag = 'scratch operand']
  %s0 = inlined_call_operand.hbm [shape: f32[8,256], index: 0, kind: input, shape index: {}]
  %s1 = inlined_call_operand.hbm [shape: f32[8,256], index: 1, kind: input, shape index: {}]
  %s2 = inlined_call_operand.hbm [shape: f32[2,8,128], index: 2, kind: output, shape index: {}]
  %s3 = sld [smem:[#allocation0]]
  $region57: #{tpu_custom_call.1} parent=0
    _
  %s5 = ssub.s32 1, %s3
  %s6 = scalar_select 0, %s5, %s3
  $region1: #{tpu_custom_call.1} parent=0
    #allocation6 [shape = 'u8[8192]{0}', space=vmem, size = 0x2000, scoped, tag = 'input window, operand 0']
    #allocation7 [shape = 's32[2]{0}', space=sflag, size = 0x8, scoped, tag = 'scoped memory for tpu_custom_call.1']
    #allocation8 [shape = 's32[2]{0}', space=sflag, size = 0x8, scoped, tag = 'scoped memory for tpu_custom_call.1']
    #allocation9 [shape = 'u8[8192]{0}', space=vmem, size = 0x2000, scoped, tag = 'input window, operand 1']
    #allocation10 [shape = 's32[2]{0}', space=sflag, size = 0x8, scoped, tag = 'scoped memory for tpu_custom_call.1']
    #allocation11 [shape = 'u8[8192]{0}', space=vmem, size = 0x2000, scoped, tag = 'output window, operand 0']
    %7 = vsyncpa [#allocation7], 0
    %s8 = scalar_lea.sflag [#allocation7], 1
    %9 = vsyncpa %s8, 0
    %10 = vsyncpa [#allocation10], 0
    %s11 = scalar_lea.sflag [#allocation10], 1
    %12 = vsyncpa %s11, 0
    %13 = vsyncpa [#allocation8], 0
    %s14 = scalar_lea.sflag [#allocation8], 1
    %15 = vsyncpa %s14, 0
    loop: start=0, step=1, limit=4
    $region2: #{tpu_custom_call.1} parent=1 // loop_pre_header
      _
    $region3: #{tpu_custom_call.1} parent=1 // loop_header
      %s17 = sphi 0, %s21
      %p18 = scmp.ge.s32.totalorder %s17, 4
      %s24 = sphi 0, %s36
      %s25 = sphi 0, %s32
      %s26 = sphi 0, %s24
      %s27 = sphi 0, %s25
      %s28 = sphi 0, %s26
      %s29 = sphi 0, %s27
      %s41 = sphi 0, %s43
      %s44 = sphi 0, %s41
      %s45 = sphi 0, %s44
      %s61 = sphi 0, %s45
      %s69 = sphi 0, %s71
      %s72 = sphi 0, %s69
      %s73 = sphi 0, %s72
      %s89 = sphi 0, %s73
      %s95 = sphi 0, %s97
      %s98 = sphi 0, %s95
      %s99 = sphi 0, %s98
      %s115 = sphi 0, %s99
    $region4: #{tpu_custom_call.1} parent=1 // loop_header_branch
      %20 = sbr.rel (%p18) target = $region8
    $region5: #{tpu_custom_call.1} parent=1 // loop_body
      %s22 = ssub.s32 %s17, 1
      %s23 = ssub.s32 %s17, 2
      %s30 = sadd.s32 1, %s25
      %p31 = scmp.ge.s32.totalorder %s30, 1
      %s32 = scalar_select %p31, 0, %s30
      %s33 = sadd.s32 1, %s24
      %s34 = scalar_select %p31, %s33, %s24
      %p35 = scmp.ge.s32.totalorder %s34, 2
      %s36 = scalar_select %p35, 0, %s34
      %s37 = sadd.s32 %s24, %s25
      %s38 = sadd.s32 %s36, %s32
      %s39 = ssub.s32 %s37, %s38
      %p40 = scmp.eq.s32.totalorder %s39, 0
      %s42 = sadd.s32 %s41, 1
      %s43 = scalar_select %p40, %s41, %s42
      %p46 = pneg %p40
      %p47 = scmp.eq.s32.totalorder %s17, 1
      %p48 = por %p46, %p47
      %p49 = scmp.ne.s32.totalorder %s41, %s44
      %p50 = scmp.eq.s32.totalorder %s17, 0
      %p51 = por %p49, %p50
      %p52 = scmp.ne.s32.totalorder %s41, %s44
      %p53 = scmp.eq.s32.totalorder %s22, 1
      %p54 = por %p52, %p53
      %p55 = scmp.ne.s32.totalorder %s44, %s45
      %p56 = scmp.eq.s32.totalorder %s22, 0
      %p57 = por %p55, %p56
      %p58 = scmp.ne.s32.totalorder %s44, %s45
      %p59 = scmp.eq.s32.totalorder %s23, 1
      %p60 = por %p58, %p59
      %p62 = scmp.ne.s32.totalorder %s45, %s61
      %p63 = scmp.eq.s32.totalorder %s23, 0
      %p64 = por %p62, %p63
      %s65 = sadd.s32 %s24, %s25
      %s66 = sadd.s32 %s36, %s32
      %s67 = ssub.s32 %s65, %s66
      %p68 = scmp.eq.s32.totalorder %s67, 0
      %s70 = sadd.s32 %s69, 1
      %s71 = scalar_select %p68, %s69, %s70
      %p74 = pneg %p68
      %p75 = scmp.eq.s32.totalorder %s17, 1
      %p76 = por %p74, %p75
      %p77 = scmp.ne.s32.totalorder %s69, %s72
      %p78 = scmp.eq.s32.totalorder %s17, 0
      %p79 = por %p77, %p78
      %p80 = scmp.ne.s32.totalorder %s69, %s72
      %p81 = scmp.eq.s32.totalorder %s22, 1
      %p82 = por %p80, %p81
      %p83 = scmp.ne.s32.totalorder %s72, %s73
      %p84 = scmp.eq.s32.totalorder %s22, 0
      %p85 = por %p83, %p84
      %p86 = scmp.ne.s32.totalorder %s72, %s73
      %p87 = scmp.eq.s32.totalorder %s23, 1
      %p88 = por %p86, %p87
      %p90 = scmp.ne.s32.totalorder %s73, %s89
      %p91 = scmp.eq.s32.totalorder %s23, 0
      %p92 = por %p90, %p91
      %s93 = ssub.s32 %s24, %s36
      %p94 = scmp.eq.s32.totalorder %s93, 0
      %s96 = sadd.s32 %s95, 1
      %s97 = scalar_select %p94, %s95, %s96
      %p100 = pneg %p94
      %p101 = scmp.eq.s32.totalorder %s17, 1
      %p102 = por %p100, %p101
      %p103 = scmp.ne.s32.totalorder %s95, %s98
      %p104 = scmp.eq.s32.totalorder %s17, 0
      %p105 = por %p103, %p104
      %p106 = scmp.ne.s32.totalorder %s95, %s98
      %p107 = scmp.eq.s32.totalorder %s22, 1
      %p108 = por %p106, %p107
      %p109 = scmp.ne.s32.totalorder %s98, %s99
      %p110 = scmp.eq.s32.totalorder %s22, 0
      %p111 = por %p109, %p110
      %p112 = scmp.ne.s32.totalorder %s98, %s99
      %p113 = scmp.eq.s32.totalorder %s23, 1
      %p114 = por %p112, %p113
      %p116 = scmp.ne.s32.totalorder %s99, %s115
      %p117 = scmp.eq.s32.totalorder %s23, 0
      %p118 = por %p116, %p117
      %p119 = scmp.le.s32.totalorder 1, %s17
      %p120 = scmp.lt.s32.totalorder %s17, 3
      %p121 = pnand %p119, %p120
      %p122 = pneg %p121
      // Predicated region
      $region9: #{tpu_custom_call.1} parent=5 // pred_check
        _
      $region10: #{tpu_custom_call.1} parent=5 // pred_check_branch
        %124 = sbr.rel (%p121) target = $region12
      $region11: #{tpu_custom_call.1} parent=5 // pred_region
        %s125 = ssub.s32 %s17, 1
      $region12: #{tpu_custom_call.1} parent=5 // pred_fallthru
        _
      %p126 = scmp.lt.s32.totalorder %s17, 2
      // Predicated region
      $region13: #{tpu_custom_call.1} parent=5 // pred_check
        %p127 = pneg %p126
      $region14: #{tpu_custom_call.1} parent=5 // pred_check_branch
        %129 = sbr.rel (%p127) target = $region16
      $region15: #{tpu_custom_call.1} parent=5 // pred_region
        // Predicated region
        $region17: #{tpu_custom_call.1} parent=15 // pred_check
          %p130 = pneg %p51
        $region18: #{tpu_custom_call.1} parent=15 // pred_check_branch
          %132 = sbr.rel (%p130) target = $region20
        $region19: #{tpu_custom_call.1} parent=15 // pred_region
          %s133 = sand.u32 %s41, 1
          %s134 = scalar_lea.sflag [#allocation7], %s133
          %s135 = sand.u32 %s41, 1
          %s136 = smul.addr %s135, 8
          %s137 = scalar_lea.vmem [#allocation6], %s136
          %s138 = sadd.s32 %s24, %s25
          %140 = vsyncadd %s134, 0
          %s141 = smul.addr %s138, 8
          %s142 = scalar_lea.hbm %s0, %s141
          %s144 = sshll.u32 %s142, 4
          %s145 = int_to_ptr.hbm [resolvable:$true] %s144
          %s146 = sshll.u32 %s137, 4
          %s147 = int_to_ptr.vmem [resolvable:$true] %s146
          %149 = dma.hbm_to_vmem [thread:$0]  %s145, 128, %s147, %s134
        $region20: #{tpu_custom_call.1} parent=15 // pred_fallthru
          _
        // Predicated region
        $region21: #{tpu_custom_call.1} parent=15 // pred_check
          %p150 = pneg %p79
        $region22: #{tpu_custom_call.1} parent=15 // pred_check_branch
          %152 = sbr.rel (%p150) target = $region24
        $region23: #{tpu_custom_call.1} parent=15 // pred_region
          %s153 = sand.u32 %s69, 1
          %s154 = scalar_lea.sflag [#allocation10], %s153
          %s155 = sand.u32 %s69, 1
          %s156 = smul.addr %s155, 8
          %s157 = scalar_lea.vmem [#allocation9], %s156
          %s158 = sadd.s32 %s24, %s25
          %160 = vsyncadd %s154, 0
          %s161 = smul.addr %s158, 8
          %s162 = scalar_lea.hbm %s1, %s161
          %s164 = sshll.u32 %s162, 4
          %s165 = int_to_ptr.hbm [resolvable:$true] %s164
          %s166 = sshll.u32 %s157, 4
          %s167 = int_to_ptr.vmem [resolvable:$true] %s166
          %169 = dma.hbm_to_vmem [thread:$0]  %s165, 128, %s167, %s154
        $region24: #{tpu_custom_call.1} parent=15 // pred_fallthru
          _
      $region16: #{tpu_custom_call.1} parent=5 // pred_fallthru
        _
      %p170 = scmp.le.s32.totalorder 1, %s17
      %p171 = scmp.lt.s32.totalorder %s17, 3
      %p172 = pnand %p170, %p171
      %p173 = pneg %p172
      // Predicated region
      $region25: #{tpu_custom_call.1} parent=5 // pred_check
        _
      $region26: #{tpu_custom_call.1} parent=5 // pred_check_branch
        %175 = sbr.rel (%p172) target = $region28
      $region27: #{tpu_custom_call.1} parent=5 // pred_region
        %s176 = ssub.s32 %s17, 1
        %s177 = sand.u32 %s44, 1
        %s178 = scalar_lea.sflag [#allocation7], %s177
        %s179 = sand.u32 %s44, 1
        %s180 = smul.addr %s179, 8
        %s181 = scalar_lea.vmem [#allocation6], %s180
        // Predicated region
        $region29: #{tpu_custom_call.1} parent=27 // pred_check
          %p182 = pneg %p57
        $region30: #{tpu_custom_call.1} parent=27 // pred_check_branch
          %184 = sbr.rel (%p182) target = $region32
        $region31: #{tpu_custom_call.1} parent=27 // pred_region
          %186 = dma.done %s178, 128
        $region32: #{tpu_custom_call.1} parent=27 // pred_fallthru
          _
        %s187 = sand.u32 %s72, 1
        %s188 = scalar_lea.sflag [#allocation10], %s187
        %s189 = sand.u32 %s72, 1
        %s190 = smul.addr %s189, 8
        %s191 = scalar_lea.vmem [#allocation9], %s190
        // Predicated region
        $region33: #{tpu_custom_call.1} parent=27 // pred_check
          %p192 = pneg %p85
        $region34: #{tpu_custom_call.1} parent=27 // pred_check_branch
          %194 = sbr.rel (%p192) target = $region36
        $region35: #{tpu_custom_call.1} parent=27 // pred_region
          %196 = dma.done %s188, 128
        $region36: #{tpu_custom_call.1} parent=27 // pred_fallthru
          _
        %s197 = sand.u32 %s44, 1
        %s198 = scalar_lea.sflag [#allocation7], %s197
        %s199 = sand.u32 %s44, 1
        %s200 = smul.addr %s199, 8
        %s201 = scalar_lea.vmem [#allocation6], %s200
        %p202 = pneg %p57
        %p203 = pneg %p54
        %s204 = sand.u32 %s72, 1
        %s205 = scalar_lea.sflag [#allocation10], %s204
        %s206 = sand.u32 %s72, 1
        %s207 = smul.addr %s206, 8
        %s208 = scalar_lea.vmem [#allocation9], %s207
        %p209 = pneg %p85
        %p210 = pneg %p82
        %p211 = pneg %p111
        %p212 = pneg %p108
        %s213 = sand.u32 %s98, 1
        %s214 = scalar_lea.sflag [#allocation8], %s213
        %s215 = sand.u32 %s98, 1
        %s216 = smul.addr %s215, 8
        %s217 = scalar_lea.vmem [#allocation11], %s216
        %s218 = sadd.s32 %s26, %s27
        %s219 = sadd.s32 %s26, %s27
        %p220 = scmp.eq.s32.totalorder %s27, 0
        // Predicated region
        $region37: #{tpu_custom_call.1} parent=27 // pred_check
          %p221 = pneg %p220
        $region38: #{tpu_custom_call.1} parent=27 // pred_check_branch
          %223 = sbr.rel (%p221) target = $region40
        $region39: #{tpu_custom_call.1} parent=27 // pred_region
          %vm224 = vcmask 7168
          %225 = vst.msk [vmem:[#allocation2] sm:$0xff] %vm224, 0.0
          %226 = vst.msk [vmem:[#allocation3] sm:$0xff] %vm224, 0.0
          %227 = vst.msk [vmem:[#allocation4] sm:$0xff] %vm224, 0.0
          %228 = vst.msk [vmem:[#allocation5] sm:$0xff] %vm224, 0.0
        $region40: #{tpu_custom_call.1} parent=27 // pred_fallthru
          _
        %v229 = vld [vmem:[%s181] sm:$0xff]
        %v230 = vld [vmem:[%s191] sm:$0xff]
        %v231 = vand.u32 2147483647, %v229
        %v232 = vsub.f32 0.0, %v231
        %v233 = vmul.f32 %v232, 1.442695
        %v234 = vpow.pop %v233
        %v235 = vadd.f32 %v234, 1.0
        %v236 = vrcp.pop %v235
        %v237 = vmul.f32 %v235, %v236
        %v238 = vsub.f32 2.0, %v237
        %v239 = vmul.f32 %v236, %v238
        %vm240 = vcmp.ge.f32.partialorder %v229, 0.0
        %v241 = vsel %vm240, 1.0, %v234
        %v242 = vmul.f32 %v241, %v239
        %v243 = vmax.f32 %v229, 0.0
        %v244 = vmul.f32 %v229, %v230
        %v245 = vsub.f32 %v243, %v244
        %v246 = vadd.f32 %v234, 1.0
        %v247 = vlog2.pop %v246
        %v248 = vmul.f32 %v247, 0.6931472
        %v249 = vmul.f32 -0.5, %v234
        %v250 = vadd.f32 %v249, 1.0
        %v251 = vmul.f32 %v250, %v234
        %v252 = vand.u32 2147483647, %v234
        %vm253 = vcmp.lt.f32.partialorder %v252, 0.0004427343
        %v254 = vsel %vm253, %v251, %v248
        %v255 = vadd.f32 %v245, %v254
        %v256 = vld [vmem:[#allocation2] sm:$0xff]
        %v257 = vmul.f32 %v242, %v230
        %258 = vadd.xlane.f32.xlu0 %v257
        %v259 = vpop.xlane.xlu0 %258
        %v260 = vadd.f32 %v256, %v259
        %vm261 = vcmask 7168
        %262 = vst.msk [vmem:[#allocation2] sm:$0xff] %vm261, %v260
        %v263 = vld [vmem:[#allocation3] sm:$0xff]
        %264 = vadd.xlane.f32.xlu0 %v242
        %v265 = vpop.xlane.xlu0 %264
        %v266 = vadd.f32 %v263, %v265
        %267 = vst.msk [vmem:[#allocation3] sm:$0xff] %vm261, %v266
        %v268 = vld [vmem:[#allocation4] sm:$0xff]
        %269 = vadd.xlane.f32.xlu0 %v230
        %v270 = vpop.xlane.xlu0 %269
        %v271 = vadd.f32 %v268, %v270
        %272 = vst.msk [vmem:[#allocation4] sm:$0xff] %vm261, %v271
        %v273 = vld [vmem:[#allocation5] sm:$0xff]
        %274 = vadd.xlane.f32.xlu0 %v255
        %v275 = vpop.xlane.xlu0 %274
        %v276 = vadd.f32 %v273, %v275
        %277 = vst.msk [vmem:[#allocation5] sm:$0xff] %vm261, %v276
        // Predicated region
        $region41: #{tpu_custom_call.1} parent=27 // pred_check
          %p278 = pneg %p220
        $region42: #{tpu_custom_call.1} parent=27 // pred_check_branch
          %280 = sbr.rel (%p278) target = $region44
        $region43: #{tpu_custom_call.1} parent=27 // pred_region
          %v281 = vlaneseq
          %v282 = vand.u32 %v281, 127
          %vm283 = vcmp.eq.s32.totalorder %v282, 0
          %v284 = vld [vmem:[#allocation2] sm:$0xff]
          %286 = vset.pattern.permute.xlu0 0
          %287 = vperm.xlu0 %286, %v284
          %v288 = vpop.permute.xlu0 %287
          %v290 = vsel %vm283, %v288, 0.0
          %vm291 = vcmp.eq.s32.totalorder %v282, 1
          %v292 = vld [vmem:[#allocation3] sm:$0xff]
          %294 = vset.pattern.permute.xlu0 0
          %295 = vperm.xlu0 %294, %v292
          %v296 = vpop.permute.xlu0 %295
          %v298 = vsel %vm291, %v296, 0.0
          %v299 = vadd.f32 %v290, %v298
          %vm300 = vcmp.eq.s32.totalorder %v282, 2
          %v301 = vld [vmem:[#allocation4] sm:$0xff]
          %303 = vset.pattern.permute.xlu0 0
          %304 = vperm.xlu0 %303, %v301
          %v305 = vpop.permute.xlu0 %304
          %v307 = vsel %vm300, %v305, 0.0
          %v308 = vadd.f32 %v299, %v307
          %vm309 = vcmp.eq.s32.totalorder %v282, 3
          %v310 = vld [vmem:[#allocation5] sm:$0xff]
          %312 = vset.pattern.permute.xlu0 0
          %313 = vperm.xlu0 %312, %v310
          %v314 = vpop.permute.xlu0 %313
          %v316 = vsel %vm309, %v314, 0.0
          %v317 = vadd.f32 %v308, %v316
          %318 = vst [vmem:[%s217] sm:$0xff] %v317
        $region44: #{tpu_custom_call.1} parent=27 // pred_fallthru
          _
        %s319 = sand.u32 %s98, 1
        %s320 = scalar_lea.sflag [#allocation8], %s319
        %s321 = sand.u32 %s98, 1
        %s322 = smul.addr %s321, 8
        %s323 = scalar_lea.vmem [#allocation11], %s322
        // Predicated region
        $region45: #{tpu_custom_call.1} parent=27 // pred_check
          %p324 = pneg %p108
        $region46: #{tpu_custom_call.1} parent=27 // pred_check_branch
          %326 = sbr.rel (%p324) target = $region48
        $region47: #{tpu_custom_call.1} parent=27 // pred_region
          %328 = vsyncadd %s320, 0
          %s329 = smul.addr %s26, 8
          %s330 = scalar_lea.hbm %s2, %s329
          %s332 = sshll.u32 %s323, 4
          %s333 = int_to_ptr.vmem [resolvable:$true] %s332
          %s334 = sshll.u32 %s330, 4
          %s335 = int_to_ptr.hbm [resolvable:$true] %s334
          %337 = dma.vmem_to_hbm [thread:$0]  %s333, 128, %s335, %s320
        $region48: #{tpu_custom_call.1} parent=27 // pred_fallthru
          _
      $region28: #{tpu_custom_call.1} parent=5 // pred_fallthru
        _
      %p338 = scmp.le.s32.totalorder 2, %s17
      // Predicated region
      $region49: #{tpu_custom_call.1} parent=5 // pred_check
        %p339 = pneg %p338
      $region50: #{tpu_custom_call.1} parent=5 // pred_check_branch
        %341 = sbr.rel (%p339) target = $region52
      $region51: #{tpu_custom_call.1} parent=5 // pred_region
        %s342 = ssub.s32 %s17, 2
        // Predicated region
        $region53: #{tpu_custom_call.1} parent=51 // pred_check
          %p343 = pneg %p114
        $region54: #{tpu_custom_call.1} parent=51 // pred_check_branch
          %345 = sbr.rel (%p343) target = $region56
        $region55: #{tpu_custom_call.1} parent=51 // pred_region
          %s346 = sand.u32 %s99, 1
          %s347 = scalar_lea.sflag [#allocation8], %s346
          %s348 = sand.u32 %s99, 1
          %s349 = smul.addr %s348, 8
          %s350 = scalar_lea.vmem [#allocation11], %s349
          %352 = dma.done %s347, 128
        $region56: #{tpu_custom_call.1} parent=51 // pred_fallthru
          _
      $region52: #{tpu_custom_call.1} parent=5 // pred_fallthru
        _
    $region6: #{tpu_custom_call.1} parent=1 // loop_footer
      %s21 = sadd.s32 1, %s17
    $region7: #{tpu_custom_call.1} parent=1 // loop_footer_branch
      %16 = sbr.rel target = $region3
    $region8: #{tpu_custom_call.1} parent=1 // loop_exit
      _
    %353 = vsyncpa [#allocation7], 1
    %s354 = scalar_lea.sflag [#allocation7], 1
    %355 = vsyncpa %s354, 1
    %356 = vsyncpa [#allocation10], 1
    %s357 = scalar_lea.sflag [#allocation10], 1
    %358 = vsyncpa %s357, 1
    %359 = vsyncpa [#allocation8], 1
    %s360 = scalar_lea.sflag [#allocation8], 1
    %361 = vsyncpa %s360, 1

</llo_original>
